<compile_context>
chip_gen: v7x
topology: tpu7x:2x2x1
jax: 0.10.0
libtpu: 0.0.40
codegen_flags: <defaults>
</compile_context>

<pallas_src>
import functools

import jax
import jax.numpy as jnp
from jax.experimental import pallas as pl
from jax.experimental.pallas import tpu as pltpu

# Static packed-buffer layout constants (architecture is fixed; only nA<=128 varies).
_ROW_OFFS = (0, 8, 136, 392, 520)
_W_ROWS = 648
_PACK_LANES = 256
_HEAD_LANES = 128  # fc5 output padded to a full 128-lane tile


def _dqn_kernel(x_ref, w_ref, b_ref, o_ref, *, act_dtype):
    """One batch tile: 4x (bf16 matmul + bias + ReLU) then final matmul + bias.

    Matmuls take bf16 operands with f32 MXU accumulation. The bias/ReLU epilogue
    runs in `act_dtype` (bf16 on v6e/v7x, f32 on v5e and older chips).
    """
    zero = jnp.zeros((), act_dtype)
    h = x_ref[...]  # (TB, 8) bf16

    # fc1: (TB, 8) x (8, 128)  [out padded 8 -> 128]
    y = jnp.dot(h, w_ref[0:8, 0:128],
                preferred_element_type=jnp.float32) + b_ref[0:1, 0:128]
    h = jnp.maximum(y.astype(act_dtype), zero).astype(jnp.bfloat16)

    # fc2: (TB, 128) x (128, 256)  [in padded 8 -> 128; extra rows are zero]
    y = jnp.dot(h, w_ref[8:136, 0:256],
                preferred_element_type=jnp.float32) + b_ref[1:2, 0:256]
    h = jnp.maximum(y.astype(act_dtype), zero).astype(jnp.bfloat16)

    # fc3: (TB, 256) x (256, 128)
    y = jnp.dot(h, w_ref[136:392, 0:128],
                preferred_element_type=jnp.float32) + b_ref[2:3, 0:128]
    h = jnp.maximum(y.astype(act_dtype), zero).astype(jnp.bfloat16)

    # fc4: (TB, 128) x (128, 128)  [out padded 64 -> 128]
    y = jnp.dot(h, w_ref[392:520, 0:128],
                preferred_element_type=jnp.float32) + b_ref[3:4, 0:128]
    h = jnp.maximum(y.astype(act_dtype), zero).astype(jnp.bfloat16)

    # fc5: (TB, 128) x (128, 128)  [in 64 -> 128, out nA -> 128, zero padded]; no ReLU.
    y = jnp.dot(h, w_ref[520:648, 0:128],
                preferred_element_type=jnp.float32) + b_ref[4:5, 0:128]

    # Lane-dense (TB, 128) bf16 store; real Q-values live in columns [:nA].
    o_ref[...] = y.astype(jnp.bfloat16)


def _choose_tb(B, tb_max):
    """Pick a batch tile: aim for >= 2 grid steps (v7x megacore), capped at tb_max.

    TB is a multiple of 128 when large (clean MXU M-tiling) and a multiple of 16
    otherwise (bf16 activations pack 16 sublanes per vreg).
    """
    half = pl.cdiv(B, 2)
    if half >= 128:
        tb = min((half // 128) * 128, tb_max)
    else:
        tb = min(((half + 15) // 16) * 16, tb_max)
    return max(tb, 16)


@functools.partial(jax.jit,
                   static_argnames=("nA", "tb_max", "use_bf16_epilogue"))
def dqn_forward(x, w_packed, b_packed, nA, tb_max=2048, use_bf16_epilogue=False):
    B = x.shape[0]
    TB = _choose_tb(B, tb_max)
    Bp = pl.cdiv(B, TB) * TB

    x = x.astype(jnp.bfloat16)           # halve input DMA; MXU consumes bf16 anyway
    if Bp != B:
        x = jnp.pad(x, ((0, Bp - B), (0, 0)))

    grid = (Bp // TB,)
    act_dtype = jnp.bfloat16 if use_bf16_epilogue else jnp.float32
    kernel = functools.partial(_dqn_kernel, act_dtype=act_dtype)

    flops = 2 * Bp * (8 * 8 + 8 * 256 + 256 * 128 + 128 * 64 + 64 * nA)
    bytes_accessed = (Bp * 8 * 2                 # bf16 input
                      + w_packed.size * 2        # bf16 weights (once)
                      + b_packed.size * 4        # f32 biases (once)
                      + Bp * _HEAD_LANES * 2)    # bf16 output

    out = pl.pallas_call(
        kernel,
        out_shape=jax.ShapeDtypeStruct((Bp, _HEAD_LANES), jnp.bfloat16),
        grid=grid,
        in_specs=[
            pl.BlockSpec((TB, 8), lambda i: (i, 0)),                   # x: per-tile
            pl.BlockSpec((_W_ROWS, _PACK_LANES), lambda i: (0, 0)),    # weights: resident
            pl.BlockSpec((8, _PACK_LANES), lambda i: (0, 0)),          # biases: resident
        ],
        out_specs=pl.BlockSpec((TB, _HEAD_LANES), lambda i: (i, 0)),
        compiler_params=pltpu.CompilerParams(
            dimension_semantics=("parallel",),
            vmem_limit_bytes=32 * 1024 * 1024,
        ),
        cost_estimate=pl.CostEstimate(
            flops=flops, transcendentals=0, bytes_accessed=bytes_accessed),
    )(x, w_packed, b_packed)

    return out[:B, :nA].astype(jnp.float32)


def init_linear(key, in_dim, out_dim):
    """PyTorch-style init U(-1/sqrt(in), 1/sqrt(in)); weight stored as (in, out)."""
    kw, kb = jax.random.split(key)
    bound = 1.0 / jnp.sqrt(jnp.float32(in_dim))
    w = jax.random.uniform(kw, (in_dim, out_dim), jnp.float32, -bound, bound)
    b = jax.random.uniform(kb, (out_dim,), jnp.float32, -bound, bound)
    return w, b


def make_params(key, nA):
    dims = [(8, 8), (8, 256), (256, 128), (128, 64), (64, nA)]
    keys = jax.random.split(key, len(dims))
    return [init_linear(k, i, o) for k, (i, o) in zip(keys, dims)]


def pack_params(params, nA):
    """Pack 5 (w, b) pairs into one bf16 weight buffer + one f32 bias buffer."""
    assert nA <= _HEAD_LANES, "nA must be <= 128 for the lane-padded head"
    w_buf = jnp.zeros((_W_ROWS, _PACK_LANES), jnp.bfloat16)
    b_buf = jnp.zeros((8, _PACK_LANES), jnp.float32)
    for i, (w, b) in enumerate(params):
        r = _ROW_OFFS[i]
        w_buf = w_buf.at[r:r + w.shape[0], :w.shape[1]].set(w.astype(jnp.bfloat16))
        b_buf = b_buf.at[i, :b.shape[0]].set(b.astype(jnp.float32))
    return w_buf, b_buf


def reference_forward(x, params, use_bf16_epilogue):
    """Mirrors the kernel math: bf16 matmul operands, f32 accumulate,
    act_dtype bias/ReLU epilogue, bf16 final store."""
    act_dtype = jnp.bfloat16 if use_bf16_epilogue else jnp.float32
    zero = jnp.zeros((), act_dtype)
    h = x.astype(jnp.bfloat16)
    y = None
    for idx, (w, b) in enumerate(params):
        y = jnp.dot(h, w.astype(jnp.bfloat16),
                    preferred_element_type=jnp.float32) + b
        if idx < len(params) - 1:
            h = jnp.maximum(y.astype(act_dtype), zero).astype(jnp.bfloat16)
        else:
            y = y.astype(jnp.bfloat16)
    return y.astype(jnp.float32)


if __name__ == "__main__":
    nA = 4
    B = 8

    # bf16 bias/ReLU epilogue only on chips with a bf16 VALU (v6e / v7x).
    kind = jax.devices()[0].device_kind.lower()
    use_bf16_epilogue = ("v6" in kind) or ("v7" in kind)

    key = jax.random.PRNGKey(0)
    k_params, k_x = jax.random.split(key)
    params = make_params(k_params, nA)
    w_packed, b_packed = pack_params(params, nA)
    x = jax.random.normal(k_x, (B, 8), jnp.float32)

    out = dqn_forward(x, w_packed, b_packed, nA,
                      use_bf16_epilogue=use_bf16_epilogue)
    out = jax.block_until_ready(out)

    ref = reference_forward(x, params, use_bf16_epilogue)
    assert out.shape == (B, nA), out.shape
    assert jnp.allclose(out, ref, atol=1e-2, rtol=1e-2), (
        float(jnp.max(jnp.abs(out - ref))))

    print("KERNEL_OK")
</pallas_src>

<mosaic_0001>
module attributes {stable_mosaic.version = 11 : i64} {
  func.func @_dqn_kernel(%arg0: i32, %arg1: memref<16x8xbf16, #tpu.memory_space<vmem>>, %arg2: memref<648x256xbf16, #tpu.memory_space<vmem>>, %arg3: memref<8x256xf32, #tpu.memory_space<vmem>>, %arg4: memref<16x128xbf16, #tpu.memory_space<vmem>>) attributes {dimension_semantics = [#tpu.dimension_semantics<parallel>], iteration_bounds = array<i64: 1>, scalar_prefetch = 0 : i64, scratch_operands = 0 : i64, tpu.core_type = #tpu.core_type<tc>, window_params = [{transform_indices = @transform_0, window_bounds = array<i64: 16, 8>}, {pipeline_mode = #tpu.pipeline_mode<synchronous>, transform_indices = @transform_1, window_bounds = array<i64: 648, 256>}, {pipeline_mode = #tpu.pipeline_mode<synchronous>, transform_indices = @transform_2, window_bounds = array<i64: 8, 256>}, {transform_indices = @transform_3, window_bounds = array<i64: 16, 128>}]} {
    %c0 = arith.constant 0 : index
    %c0_0 = arith.constant 0 : index
    %0 = vector.load %arg1[%c0, %c0_0] : memref<16x8xbf16, #tpu.memory_space<vmem>>, vector<16x8xbf16>
    %c0_1 = arith.constant 0 : index
    %c0_2 = arith.constant 0 : index
    %1 = vector.load %arg2[%c0_1, %c0_2] : memref<648x256xbf16, #tpu.memory_space<vmem>>, vector<8x128xbf16>
    %cst = arith.constant dense<0.000000e+00> : vector<16x128xf32>
    %2 = tpu.matmul %0, %1, %cst {dimension_numbers = #tpu.dot_dimension_numbers<[1], [0], [0], [1], [0, 0, 1, 1], [], []>} : vector<16x8xbf16>, vector<8x128xbf16>, vector<16x128xf32> -> vector<16x128xf32>
    %c0_3 = arith.constant 0 : index
    %c0_4 = arith.constant 0 : index
    %3 = vector.load %arg3[%c0_3, %c0_4] : memref<8x256xf32, #tpu.memory_space<vmem>>, vector<1x128xf32>
    %4 = vector.broadcast %3 : vector<1x128xf32> to vector<16x128xf32>
    %5 = arith.addf %2, %4 : vector<16x128xf32>
    %cst_5 = arith.constant 0.000000e+00 : f32
    %6 = vector.broadcast %cst_5 : f32 to vector<16x128xf32>
    %7 = arith.maximumf %5, %6 : vector<16x128xf32>
    %8 = arith.truncf %7 : vector<16x128xf32> to vector<16x128xbf16>
    %c8 = arith.constant 8 : index
    %c0_6 = arith.constant 0 : index
    %9 = vector.load %arg2[%c8, %c0_6] : memref<648x256xbf16, #tpu.memory_space<vmem>>, vector<128x256xbf16>
    %cst_7 = arith.constant dense<0.000000e+00> : vector<16x256xf32>
    %10 = tpu.matmul %8, %9, %cst_7 {dimension_numbers = #tpu.dot_dimension_numbers<[1], [0], [0], [1], [0, 0, 1, 1], [], []>} : vector<16x128xbf16>, vector<128x256xbf16>, vector<16x256xf32> -> vector<16x256xf32>
    %c1 = arith.constant 1 : index
    %c0_8 = arith.constant 0 : index
    %11 = vector.load %arg3[%c1, %c0_8] : memref<8x256xf32, #tpu.memory_space<vmem>>, vector<1x256xf32>
    %12 = vector.broadcast %11 : vector<1x256xf32> to vector<16x256xf32>
    %13 = arith.addf %10, %12 : vector<16x256xf32>
    %cst_9 = arith.constant 0.000000e+00 : f32
    %14 = vector.broadcast %cst_9 : f32 to vector<16x256xf32>
    %15 = arith.maximumf %13, %14 : vector<16x256xf32>
    %16 = arith.truncf %15 : vector<16x256xf32> to vector<16x256xbf16>
    %c136 = arith.constant 136 : index
    %c0_10 = arith.constant 0 : index
    %17 = vector.load %arg2[%c136, %c0_10] : memref<648x256xbf16, #tpu.memory_space<vmem>>, vector<256x128xbf16>
    %cst_11 = arith.constant dense<0.000000e+00> : vector<16x128xf32>
    %18 = tpu.matmul %16, %17, %cst_11 {dimension_numbers = #tpu.dot_dimension_numbers<[1], [0], [0], [1], [0, 0, 1, 1], [], []>} : vector<16x256xbf16>, vector<256x128xbf16>, vector<16x128xf32> -> vector<16x128xf32>
    %c2 = arith.constant 2 : index
    %c0_12 = arith.constant 0 : index
    %19 = vector.load %arg3[%c2, %c0_12] : memref<8x256xf32, #tpu.memory_space<vmem>>, vector<1x128xf32>
    %20 = vector.broadcast %19 : vector<1x128xf32> to vector<16x128xf32>
    %21 = arith.addf %18, %20 : vector<16x128xf32>
    %cst_13 = arith.constant 0.000000e+00 : f32
    %22 = vector.broadcast %cst_13 : f32 to vector<16x128xf32>
    %23 = arith.maximumf %21, %22 : vector<16x128xf32>
    %24 = arith.truncf %23 : vector<16x128xf32> to vector<16x128xbf16>
    %c392 = arith.constant 392 : index
    %c0_14 = arith.constant 0 : index
    %25 = vector.load %arg2[%c392, %c0_14] : memref<648x256xbf16, #tpu.memory_space<vmem>>, vector<128x128xbf16>
    %cst_15 = arith.constant dense<0.000000e+00> : vector<16x128xf32>
    %26 = tpu.matmul %24, %25, %cst_15 {dimension_numbers = #tpu.dot_dimension_numbers<[1], [0], [0], [1], [0, 0, 1, 1], [], []>} : vector<16x128xbf16>, vector<128x128xbf16>, vector<16x128xf32> -> vector<16x128xf32>
    %c3 = arith.constant 3 : index
    %c0_16 = arith.constant 0 : index
    %27 = vector.load %arg3[%c3, %c0_16] : memref<8x256xf32, #tpu.memory_space<vmem>>, vector<1x128xf32>
    %28 = vector.broadcast %27 : vector<1x128xf32> to vector<16x128xf32>
    %29 = arith.addf %26, %28 : vector<16x128xf32>
    %cst_17 = arith.constant 0.000000e+00 : f32
    %30 = vector.broadcast %cst_17 : f32 to vector<16x128xf32>
    %31 = arith.maximumf %29, %30 : vector<16x128xf32>
    %32 = arith.truncf %31 : vector<16x128xf32> to vector<16x128xbf16>
    %c520 = arith.constant 520 : index
    %c0_18 = arith.constant 0 : index
    %33 = vector.load %arg2[%c520, %c0_18] : memref<648x256xbf16, #tpu.memory_space<vmem>>, vector<128x128xbf16>
    %cst_19 = arith.constant dense<0.000000e+00> : vector<16x128xf32>
    %34 = tpu.matmul %32, %33, %cst_19 {dimension_numbers = #tpu.dot_dimension_numbers<[1], [0], [0], [1], [0, 0, 1, 1], [], []>} : vector<16x128xbf16>, vector<128x128xbf16>, vector<16x128xf32> -> vector<16x128xf32>
    %c4 = arith.constant 4 : index
    %c0_20 = arith.constant 0 : index
    %35 = vector.load %arg3[%c4, %c0_20] : memref<8x256xf32, #tpu.memory_space<vmem>>, vector<1x128xf32>
    %36 = vector.broadcast %35 : vector<1x128xf32> to vector<16x128xf32>
    %37 = arith.addf %34, %36 : vector<16x128xf32>
    %38 = arith.truncf %37 : vector<16x128xf32> to vector<16x128xbf16>
    %c0_21 = arith.constant 0 : index
    %c0_22 = arith.constant 0 : index
    %39 = vector.load %arg4[%c0_21, %c0_22] : memref<16x128xbf16, #tpu.memory_space<vmem>>, vector<16x128xbf16>
    tpu.vector_store %arg4[%c0_21, %c0_22], %38 {strides = array<i32>} : memref<16x128xbf16, #tpu.memory_space<vmem>>, vector<16x128xbf16>,
    return
  }
  func.func @transform_0(%arg0: i32) -> (i32, i32) {
    %c0_i32 = arith.constant 0 : i32
    %c0_i32_0 = arith.constant 0 : i32
    return %arg0, %c0_i32 : i32, i32
  }
  func.func @transform_1(%arg0: i32) -> (i32, i32) {
    %c0_i32 = arith.constant 0 : i32
    %c0_i32_0 = arith.constant 0 : i32
    %c0_i32_1 = arith.constant 0 : i32
    return %c0_i32, %c0_i32_0 : i32, i32
  }
  func.func @transform_2(%arg0: i32) -> (i32, i32) {
    %c0_i32 = arith.constant 0 : i32
    %c0_i32_0 = arith.constant 0 : i32
    %c0_i32_1 = arith.constant 0 : i32
    return %c0_i32, %c0_i32_0 : i32, i32
  }
  func.func @transform_3(%arg0: i32) -> (i32, i32) {
    %c0_i32 = arith.constant 0 : i32
    %c0_i32_0 = arith.constant 0 : i32
    return %arg0, %c0_i32 : i32, i32
  }
}

</mosaic_0001>

<llo_original>
// kernel: dqn_forward.1
$region0: #{dqn_forward.1}
  #allocation0 [shape = 'u32[]', space=smem, size = 0x4, offset = 0x4, fixed_abs, tag = 'smem constant byte address 0x4 - core index']
  #allocation1 [shape = 'u32[144,128]{1,0:T(1,128)}', space=vmem, size = 0x12000, scoped, tag = 'internal scratch']
  %s0 = inlined_call_operand.vmem [shape: bf16[16,8], index: 0, kind: input, shape index: {}]
  %s1 = inlined_call_operand.hbm [shape: bf16[648,256], index: 1, kind: input, shape index: {}]
  %s2 = inlined_call_operand.vmem [shape: f32[8,256], index: 2, kind: input, shape index: {}]
  %s3 = inlined_call_operand.vmem [shape: bf16[16,128], index: 3, kind: output, shape index: {}]
  %s4 = sld [smem:[#allocation0]]
  $region26: #{dqn_forward.1} parent=0
    _
  %s6 = ssub.s32 1, %s4
  %s7 = scalar_select 0, %s6, %s4
  $region1: #{dqn_forward.1} parent=0
    #allocation2 [shape = 'u8[331776]{0}', space=vmem, size = 0x51000, scoped, tag = 'input window, operand 1, single buffered']
    #allocation3 [shape = 's32[1]{0}', space=sflag, size = 0x4, scoped, tag = 'scoped memory for dqn_forward.1']
    %8 = vsyncpa [#allocation3], 0
    // Predicated region
    $region2: #{dqn_forward.1} parent=1 // pred_check
      _
    $region3: #{dqn_forward.1} parent=1 // pred_check_branch
      %10 = sbr.rel (0) target = $region5
    $region4: #{dqn_forward.1} parent=1 // pred_region
      _
    $region5: #{dqn_forward.1} parent=1 // pred_fallthru
      _
    // Predicated region
    $region6: #{dqn_forward.1} parent=1 // pred_check
      _
    $region7: #{dqn_forward.1} parent=1 // pred_check_branch
      %12 = sbr.rel (0) target = $region9
    $region8: #{dqn_forward.1} parent=1 // pred_region
      %s14 = ssub.s32 10368, 10368
      %15 = vsyncadd [#allocation3], %s14
      %s16 = sshll.u32 [#allocation2], 4
      %s17 = int_to_ptr.vmem [resolvable:$true] %s16
      %22 = dma.hbm_to_vmem [thread:$0]  %s1, 10368, %s17, [#allocation3], 128, 128, 8
    $region9: #{dqn_forward.1} parent=1 // pred_fallthru
      _
    // Predicated region
    $region10: #{dqn_forward.1} parent=1 // pred_check
      _
    $region11: #{dqn_forward.1} parent=1 // pred_check_branch
      %24 = sbr.rel (0) target = $region13
    $region12: #{dqn_forward.1} parent=1 // pred_region
      _
    $region13: #{dqn_forward.1} parent=1 // pred_fallthru
      _
    // Predicated region
    $region14: #{dqn_forward.1} parent=1 // pred_check
      _
    $region15: #{dqn_forward.1} parent=1 // pred_check_branch
      %26 = sbr.rel (0) target = $region17
    $region16: #{dqn_forward.1} parent=1 // pred_region
      %27 = dma.done [#allocation3], 10368
    $region17: #{dqn_forward.1} parent=1 // pred_fallthru
      _
    %v29 = vld [vmem:[%s0] sm:$0xf]
    %v30 = vld [vmem:[%s0 + $0x4] sm:$0xf]
    %v31 = vld [vmem:[#allocation2] sm:$0xf]
    %v32 = vld [vmem:[%s2] ss:$0 sm:$0xff]
    %v35 = vunpack.c.l.b16 %v29
    %v36 = vunpack.c.l.b16 %v30
    %v37 = vpack.c.b16 %v36, %v35
    %vm38 = vcmask 64512
    %v40 = vsel %vm38, %v37, 0
    %vm42 = vcmask 1043456
    %v44 = vsel %vm42, %v31, 0
    %46 = vmatprep.subr.bf16.mxu0 0
    %47 = vmatpush1.bf16.msra.mxu0 %v44
    %48 = vmatprep.subr.bf16.mxu0 0
    %49 = vmatpush1.bf16.msra.mxu0 0
    %50 = vmatprep.subr.bf16.mxu0 0
    %51 = vmatpush1.bf16.msra.mxu0 0
    %52 = vmatprep.subr.bf16.mxu0 0
    %53 = vmatpush1.bf16.msra.mxu0 0
    %54 = vmatprep.subr.bf16.mxu0 0
    %55 = vmatpush1.bf16.msra.mxu0 0
    %56 = vmatprep.subr.bf16.mxu0 0
    %57 = vmatpush1.bf16.msra.mxu0 0
    %58 = vmatprep.subr.bf16.mxu0 0
    %59 = vmatpush1.bf16.msra.mxu0 0
    %60 = vmatprep.subr.bf16.mxu0 0
    %61 = vmatpush1.bf16.msra.mxu0 0
    %62 = vmatprep.subr.bf16.mxu0 0
    %63 = vmatpush1.bf16.msra.mxu0 0
    %64 = vmatprep.subr.bf16.mxu0 0
    %65 = vmatpush1.bf16.msra.mxu0 0
    %66 = vmatprep.subr.bf16.mxu0 0
    %67 = vmatpush1.bf16.msra.mxu0 0
    %68 = vmatprep.subr.bf16.mxu0 0
    %69 = vmatpush1.bf16.msra.mxu0 0
    %70 = vmatprep.subr.bf16.mxu0 0
    %71 = vmatpush1.bf16.msra.mxu0 0
    %72 = vmatprep.subr.bf16.mxu0 0
    %73 = vmatpush1.bf16.msra.mxu0 0
    %74 = vmatprep.subr.bf16.mxu0 0
    %75 = vmatpush1.bf16.msra.mxu0 0
    %76 = vmatprep.subr.bf16.mxu0 0
    %77 = vmatpush1.bf16.msra.mxu0 0
    %78 = vmatprep.mubr.bf16.mxu0 0
    %79 = vmatmul.mubr.bf16.gmra.mrb[0].mxu0 %v40
    %v80 = vpop.f32.mrb[0].mxu0
    %v81 = vadd.f32 %v32, %v80
    %v82 = vpop.f32.mrb[0].mxu0
    %v83 = vpop.f32.mrb[0].mxu0
    %v84 = vadd.f32 %v32, %v83
    %v85 = vpop.f32.mrb[0].mxu0
    %86 = vdwg.mxu0
    %v87 = vmax.f32 %v81, 0.0
    %v88 = vmax.f32 %v84, 0.0
    %v89 = vpack.c.bf16 %v88, %v87
    %v90 = vld [vmem:[#allocation2 + $0x8] sm:$0xff]
    %v91 = vld [vmem:[#allocation2 + $0x10] sm:$0xff]
    %v92 = vld [vmem:[#allocation2 + $0x18] sm:$0xff]
    %v93 = vld [vmem:[#allocation2 + $0x20] sm:$0xff]
    %v94 = vld [vmem:[#allocation2 + $0x28] sm:$0xff]
    %v95 = vld [vmem:[#allocation2 + $0x30] sm:$0xff]
    %v96 = vld [vmem:[#allocation2 + $0x38] sm:$0xff]
    %v97 = vld [vmem:[#allocation2 + $0x40] sm:$0xff]
    %v98 = vld [vmem:[#allocation2 + $0x48] sm:$0xff]
    %v99 = vld [vmem:[#allocation2 + $0x50] sm:$0xff]
    %v100 = vld [vmem:[#allocation2 + $0x58] sm:$0xff]
    %v101 = vld [vmem:[#allocation2 + $0x60] sm:$0xff]
    %v102 = vld [vmem:[#allocation2 + $0x68] sm:$0xff]
    %v103 = vld [vmem:[#allocation2 + $0x70] sm:$0xff]
    %v104 = vld [vmem:[#allocation2 + $0x78] sm:$0xff]
    %v105 = vld [vmem:[#allocation2 + $0x80] sm:$0xff]
    %s106 = scalar_lea.vmem %s2, 1
    %v107 = vld [vmem:[%s106] ss:$8 sm:$0x3]
    %v109 = vlaneseq
    %v110 = vshrl.u32 %v109, 7
    %v111 = vsub.s32 0, %v110
    %v112 = vrot.slane %v107, %v111
    %v113 = vlaneseq
    %v114 = vshrl.u32 %v113, 7
    %v115 = vsub.s32 1, %v114
    %v116 = vrot.slane %v107, %v115
    %v135 = vunpack.c.l.b16 %v90
    %v136 = vunpack.c.h.b16 %v90
    %v137 = vunpack.c.l.b16 %v91
    %v138 = vunpack.c.h.b16 %v91
    %v139 = vunpack.c.l.b16 %v92
    %v140 = vunpack.c.h.b16 %v92
    %v141 = vunpack.c.l.b16 %v93
    %v142 = vunpack.c.h.b16 %v93
    %v143 = vunpack.c.l.b16 %v94
    %v144 = vunpack.c.h.b16 %v94
    %v145 = vunpack.c.l.b16 %v95
    %v146 = vunpack.c.h.b16 %v95
    %v147 = vunpack.c.l.b16 %v96
    %v148 = vunpack.c.h.b16 %v96
    %v149 = vunpack.c.l.b16 %v97
    %v150 = vunpack.c.h.b16 %v97
    %v151 = vunpack.c.l.b16 %v98
    %v152 = vunpack.c.h.b16 %v98
    %v153 = vunpack.c.l.b16 %v99
    %v154 = vunpack.c.h.b16 %v99
    %v155 = vunpack.c.l.b16 %v100
    %v156 = vunpack.c.h.b16 %v100
    %v157 = vunpack.c.l.b16 %v101
    %v158 = vunpack.c.h.b16 %v101
    %v159 = vunpack.c.l.b16 %v102
    %v160 = vunpack.c.h.b16 %v102
    %v161 = vunpack.c.l.b16 %v103
    %v162 = vunpack.c.h.b16 %v103
    %v163 = vunpack.c.l.b16 %v104
    %v164 = vunpack.c.h.b16 %v104
    %v165 = vunpack.c.l.b16 %v105
    %v166 = vunpack.c.h.b16 %v105
    %v167 = vpack.c.b16 %v137, %v135
    %v168 = vpack.c.b16 %v138, %v136
    %v169 = vpack.c.b16 %v141, %v139
    %v170 = vpack.c.b16 %v142, %v140
    %v171 = vpack.c.b16 %v145, %v143
    %v172 = vpack.c.b16 %v146, %v144
    %v173 = vpack.c.b16 %v149, %v147
    %v174 = vpack.c.b16 %v150, %v148
    %v175 = vpack.c.b16 %v153, %v151
    %v176 = vpack.c.b16 %v154, %v152
    %v177 = vpack.c.b16 %v157, %v155
    %v178 = vpack.c.b16 %v158, %v156
    %v179 = vpack.c.b16 %v161, %v159
    %v180 = vpack.c.b16 %v162, %v160
    %v181 = vpack.c.b16 %v165, %v163
    %v182 = vpack.c.b16 %v166, %v164
    %199 = vmatprep.subr.bf16.mxu0 %v168
    %200 = vmatpush1.bf16.msra.mxu0 %v167
    %201 = vmatprep.subr.bf16.mxu0 %v170
    %202 = vmatpush1.bf16.msra.mxu0 %v169
    %203 = vmatprep.subr.bf16.mxu0 %v172
    %204 = vmatpush1.bf16.msra.mxu0 %v171
    %205 = vmatprep.subr.bf16.mxu0 %v174
    %206 = vmatpush1.bf16.msra.mxu0 %v173
    %207 = vmatprep.subr.bf16.mxu0 %v176
    %208 = vmatpush1.bf16.msra.mxu0 %v175
    %209 = vmatprep.subr.bf16.mxu0 %v178
    %210 = vmatpush1.bf16.msra.mxu0 %v177
    %211 = vmatprep.subr.bf16.mxu0 %v180
    %212 = vmatpush1.bf16.msra.mxu0 %v179
    %213 = vmatprep.subr.bf16.mxu0 %v182
    %214 = vmatpush1.bf16.msra.mxu0 %v181
    %215 = vmatprep.subr.bf16.mxu0 0
    %216 = vmatpush1.bf16.msra.mxu0 0
    %217 = vmatprep.subr.bf16.mxu0 0
    %218 = vmatpush1.bf16.msra.mxu0 0
    %219 = vmatprep.subr.bf16.mxu0 0
    %220 = vmatpush1.bf16.msra.mxu0 0
    %221 = vmatprep.subr.bf16.mxu0 0
    %222 = vmatpush1.bf16.msra.mxu0 0
    %223 = vmatprep.subr.bf16.mxu0 0
    %224 = vmatpush1.bf16.msra.mxu0 0
    %225 = vmatprep.subr.bf16.mxu0 0
    %226 = vmatpush1.bf16.msra.mxu0 0
    %227 = vmatprep.subr.bf16.mxu0 0
    %228 = vmatpush1.bf16.msra.mxu0 0
    %229 = vmatprep.subr.bf16.mxu0 0
    %230 = vmatpush1.bf16.msra.mxu0 0
    %231 = vmatprep.mubr.bf16.mxu0 0
    %232 = vmatmul.mubr.bf16.gmra.mrb[0].mxu0 %v89
    %v233 = vpop.f32.mrb[0].mxu0
    %v234 = vadd.f32 %v112, %v233
    %v235 = vpop.f32.mrb[0].mxu0
    %v236 = vadd.f32 %v116, %v235
    %v237 = vpop.f32.mrb[0].mxu0
    %v238 = vadd.f32 %v112, %v237
    %v239 = vpop.f32.mrb[0].mxu0
    %v240 = vadd.f32 %v116, %v239
    %241 = vdwg.mxu0
    %v242 = vmax.f32 %v234, 0.0
    %v243 = vmax.f32 %v236, 0.0
    %v244 = vmax.f32 %v238, 0.0
    %v245 = vmax.f32 %v240, 0.0
    %v246 = vpack.c.bf16 %v244, %v242
    %v247 = vpack.c.bf16 %v245, %v243
    %v248 = vld [vmem:[#allocation2 + $0x88] sm:$0xf]
    %v249 = vld [vmem:[#allocation2 + $0x90] sm:$0xf]
    %v250 = vld [vmem:[#allocation2 + $0x98] sm:$0xf]
    %v251 = vld [vmem:[#allocation2 + $0xa0] sm:$0xf]
    %v252 = vld [vmem:[#allocation2 + $0xa8] sm:$0xf]
    %v253 = vld [vmem:[#allocation2 + $0xb0] sm:$0xf]
    %v254 = vld [vmem:[#allocation2 + $0xb8] sm:$0xf]
    %v255 = vld [vmem:[#allocation2 + $0xc0] sm:$0xf]
    %v256 = vld [vmem:[#allocation2 + $0xc8] sm:$0xf]
    %v257 = vld [vmem:[#allocation2 + $0xd0] sm:$0xf]
    %v258 = vld [vmem:[#allocation2 + $0xd8] sm:$0xf]
    %v259 = vld [vmem:[#allocation2 + $0xe0] sm:$0xf]
    %v260 = vld [vmem:[#allocation2 + $0xe8] sm:$0xf]
    %v261 = vld [vmem:[#allocation2 + $0xf0] sm:$0xf]
    %v262 = vld [vmem:[#allocation2 + $0xf8] sm:$0xf]
    %v263 = vld [vmem:[#allocation2 + $0x100] sm:$0xf]
    %v264 = vld [vmem:[#allocation2 + $0x108] sm:$0xf]
    %v265 = vld [vmem:[#allocation2 + $0x110] sm:$0xf]
    %v266 = vld [vmem:[#allocation2 + $0x118] sm:$0xf]
    %v267 = vld [vmem:[#allocation2 + $0x120] sm:$0xf]
    %v268 = vld [vmem:[#allocation2 + $0x128] sm:$0xf]
    %v269 = vld [vmem:[#allocation2 + $0x130] sm:$0xf]
    %v270 = vld [vmem:[#allocation2 + $0x138] sm:$0xf]
    %v271 = vld [vmem:[#allocation2 + $0x140] sm:$0xf]
    %v272 = vld [vmem:[#allocation2 + $0x148] sm:$0xf]
    %v273 = vld [vmem:[#allocation2 + $0x150] sm:$0xf]
    %v274 = vld [vmem:[#allocation2 + $0x158] sm:$0xf]
    %v275 = vld [vmem:[#allocation2 + $0x160] sm:$0xf]
    %v276 = vld [vmem:[#allocation2 + $0x168] sm:$0xf]
    %v277 = vld [vmem:[#allocation2 + $0x170] sm:$0xf]
    %v278 = vld [vmem:[#allocation2 + $0x178] sm:$0xf]
    %v279 = vld [vmem:[#allocation2 + $0x180] sm:$0xf]
    %v280 = vld [vmem:[%s2 + $0x2] ss:$0 sm:$0xff]
    %v313 = vunpack.c.l.b16 %v248
    %v314 = vunpack.c.l.b16 %v249
    %v315 = vunpack.c.l.b16 %v250
    %v316 = vunpack.c.l.b16 %v251
    %v317 = vunpack.c.l.b16 %v252
    %v318 = vunpack.c.l.b16 %v253
    %v319 = vunpack.c.l.b16 %v254
    %v320 = vunpack.c.l.b16 %v255
    %v321 = vunpack.c.l.b16 %v256
    %v322 = vunpack.c.l.b16 %v257
    %v323 = vunpack.c.l.b16 %v258
    %v324 = vunpack.c.l.b16 %v259
    %v325 = vunpack.c.l.b16 %v260
    %v326 = vunpack.c.l.b16 %v261
    %v327 = vunpack.c.l.b16 %v262
    %v328 = vunpack.c.l.b16 %v263
    %v329 = vunpack.c.l.b16 %v264
    %v330 = vunpack.c.l.b16 %v265
    %v331 = vunpack.c.l.b16 %v266
    %v332 = vunpack.c.l.b16 %v267
    %v333 = vunpack.c.l.b16 %v268
    %v334 = vunpack.c.l.b16 %v269
    %v335 = vunpack.c.l.b16 %v270
    %v336 = vunpack.c.l.b16 %v271
    %v337 = vunpack.c.l.b16 %v272
    %v338 = vunpack.c.l.b16 %v273
    %v339 = vunpack.c.l.b16 %v274
    %v340 = vunpack.c.l.b16 %v275
    %v341 = vunpack.c.l.b16 %v276
    %v342 = vunpack.c.l.b16 %v277
    %v343 = vunpack.c.l.b16 %v278
    %v344 = vunpack.c.l.b16 %v279
    %v345 = vpack.c.b16 %v314, %v313
    %v346 = vpack.c.b16 %v316, %v315
    %v347 = vpack.c.b16 %v318, %v317
    %v348 = vpack.c.b16 %v320, %v319
    %v349 = vpack.c.b16 %v322, %v321
    %v350 = vpack.c.b16 %v324, %v323
    %v351 = vpack.c.b16 %v326, %v325
    %v352 = vpack.c.b16 %v328, %v327
    %v353 = vpack.c.b16 %v330, %v329
    %v354 = vpack.c.b16 %v332, %v331
    %v355 = vpack.c.b16 %v334, %v333
    %v356 = vpack.c.b16 %v336, %v335
    %v357 = vpack.c.b16 %v338, %v337
    %v358 = vpack.c.b16 %v340, %v339
    %v359 = vpack.c.b16 %v342, %v341
    %v360 = vpack.c.b16 %v344, %v343
    %377 = vmatprep.subr.bf16.mxu0 0
    %378 = vmatpush1.bf16.msra.mxu0 %v345
    %379 = vmatprep.subr.bf16.mxu0 0
    %380 = vmatpush1.bf16.msra.mxu0 %v346
    %381 = vmatprep.subr.bf16.mxu0 0
    %382 = vmatpush1.bf16.msra.mxu0 %v347
    %383 = vmatprep.subr.bf16.mxu0 0
    %384 = vmatpush1.bf16.msra.mxu0 %v348
    %385 = vmatprep.subr.bf16.mxu0 0
    %386 = vmatpush1.bf16.msra.mxu0 %v349
    %387 = vmatprep.subr.bf16.mxu0 0
    %388 = vmatpush1.bf16.msra.mxu0 %v350
    %389 = vmatprep.subr.bf16.mxu0 0
    %390 = vmatpush1.bf16.msra.mxu0 %v351
    %391 = vmatprep.subr.bf16.mxu0 0
    %392 = vmatpush1.bf16.msra.mxu0 %v352
    %393 = vmatprep.subr.bf16.mxu0 0
    %394 = vmatpush1.bf16.msra.mxu0 %v353
    %395 = vmatprep.subr.bf16.mxu0 0
    %396 = vmatpush1.bf16.msra.mxu0 %v354
    %397 = vmatprep.subr.bf16.mxu0 0
    %398 = vmatpush1.bf16.msra.mxu0 %v355
    %399 = vmatprep.subr.bf16.mxu0 0
    %400 = vmatpush1.bf16.msra.mxu0 %v356
    %401 = vmatprep.subr.bf16.mxu0 0
    %402 = vmatpush1.bf16.msra.mxu0 %v357
    %403 = vmatprep.subr.bf16.mxu0 0
    %404 = vmatpush1.bf16.msra.mxu0 %v358
    %405 = vmatprep.subr.bf16.mxu0 0
    %406 = vmatpush1.bf16.msra.mxu0 %v359
    %407 = vmatprep.subr.bf16.mxu0 0
    %408 = vmatpush1.bf16.msra.mxu0 %v360
    %409 = vmatprep.mubr.bf16.mxu0 %v247
    %410 = vmatmul.mubr.bf16.gmra.mrb[0].mxu0 %v246
    %v411 = vpop.f32.mrb[0].mxu0
    %v412 = vadd.f32 %v280, %v411
    %v413 = vpop.f32.mrb[0].mxu0
    %v414 = vpop.f32.mrb[0].mxu0
    %v415 = vadd.f32 %v280, %v414
    %v416 = vpop.f32.mrb[0].mxu0
    %417 = vdwg.mxu0
    %v418 = vmax.f32 %v412, 0.0
    %v419 = vmax.f32 %v415, 0.0
    %v420 = vpack.c.bf16 %v419, %v418
    %v421 = vld [vmem:[#allocation2 + $0x188] sm:$0xf]
    %v422 = vld [vmem:[#allocation2 + $0x190] sm:$0xf]
    %v423 = vld [vmem:[#allocation2 + $0x198] sm:$0xf]
    %v424 = vld [vmem:[#allocation2 + $0x1a0] sm:$0xf]
    %v425 = vld [vmem:[#allocation2 + $0x1a8] sm:$0xf]
    %v426 = vld [vmem:[#allocation2 + $0x1b0] sm:$0xf]
    %v427 = vld [vmem:[#allocation2 + $0x1b8] sm:$0xf]
    %v428 = vld [vmem:[#allocation2 + $0x1c0] sm:$0xf]
    %v429 = vld [vmem:[#allocation2 + $0x1c8] sm:$0xf]
    %v430 = vld [vmem:[#allocation2 + $0x1d0] sm:$0xf]
    %v431 = vld [vmem:[#allocation2 + $0x1d8] sm:$0xf]
    %v432 = vld [vmem:[#allocation2 + $0x1e0] sm:$0xf]
    %v433 = vld [vmem:[#allocation2 + $0x1e8] sm:$0xf]
    %v434 = vld [vmem:[#allocation2 + $0x1f0] sm:$0xf]
    %v435 = vld [vmem:[#allocation2 + $0x1f8] sm:$0xf]
    %v436 = vld [vmem:[#allocation2 + $0x200] sm:$0xf]
    %v437 = vld [vmem:[%s2 + $0x3] ss:$0 sm:$0xff]
    %v454 = vunpack.c.l.b16 %v421
    %v455 = vunpack.c.l.b16 %v422
    %v456 = vunpack.c.l.b16 %v423
    %v457 = vunpack.c.l.b16 %v424
    %v458 = vunpack.c.l.b16 %v425
    %v459 = vunpack.c.l.b16 %v426
    %v460 = vunpack.c.l.b16 %v427
    %v461 = vunpack.c.l.b16 %v428
    %v462 = vunpack.c.l.b16 %v429
    %v463 = vunpack.c.l.b16 %v430
    %v464 = vunpack.c.l.b16 %v431
    %v465 = vunpack.c.l.b16 %v432
    %v466 = vunpack.c.l.b16 %v433
    %v467 = vunpack.c.l.b16 %v434
    %v468 = vunpack.c.l.b16 %v435
    %v469 = vunpack.c.l.b16 %v436
    %v470 = vpack.c.b16 %v455, %v454
    %v471 = vpack.c.b16 %v457, %v456
    %v472 = vpack.c.b16 %v459, %v458
    %v473 = vpack.c.b16 %v461, %v460
    %v474 = vpack.c.b16 %v463, %v462
    %v475 = vpack.c.b16 %v465, %v464
    %v476 = vpack.c.b16 %v467, %v466
    %v477 = vpack.c.b16 %v469, %v468
    %486 = vmatprep.subr.bf16.mxu0 0
    %487 = vmatpush1.bf16.msra.mxu0 %v470
    %488 = vmatprep.subr.bf16.mxu0 0
    %489 = vmatpush1.bf16.msra.mxu0 %v471
    %490 = vmatprep.subr.bf16.mxu0 0
    %491 = vmatpush1.bf16.msra.mxu0 %v472
    %492 = vmatprep.subr.bf16.mxu0 0
    %493 = vmatpush1.bf16.msra.mxu0 %v473
    %494 = vmatprep.subr.bf16.mxu0 0
    %495 = vmatpush1.bf16.msra.mxu0 %v474
    %496 = vmatprep.subr.bf16.mxu0 0
    %497 = vmatpush1.bf16.msra.mxu0 %v475
    %498 = vmatprep.subr.bf16.mxu0 0
    %499 = vmatpush1.bf16.msra.mxu0 %v476
    %500 = vmatprep.subr.bf16.mxu0 0
    %501 = vmatpush1.bf16.msra.mxu0 %v477
    %502 = vmatprep.subr.bf16.mxu0 0
    %503 = vmatpush1.bf16.msra.mxu0 0
    %504 = vmatprep.subr.bf16.mxu0 0
    %505 = vmatpush1.bf16.msra.mxu0 0
    %506 = vmatprep.subr.bf16.mxu0 0
    %507 = vmatpush1.bf16.msra.mxu0 0
    %508 = vmatprep.subr.bf16.mxu0 0
    %509 = vmatpush1.bf16.msra.mxu0 0
    %510 = vmatprep.subr.bf16.mxu0 0
    %511 = vmatpush1.bf16.msra.mxu0 0
    %512 = vmatprep.subr.bf16.mxu0 0
    %513 = vmatpush1.bf16.msra.mxu0 0
    %514 = vmatprep.subr.bf16.mxu0 0
    %515 = vmatpush1.bf16.msra.mxu0 0
    %516 = vmatprep.subr.bf16.mxu0 0
    %517 = vmatpush1.bf16.msra.mxu0 0
    %518 = vmatprep.mubr.bf16.mxu0 0
    %519 = vmatmul.mubr.bf16.gmra.mrb[0].mxu0 %v420
    %v520 = vpop.f32.mrb[0].mxu0
    %v521 = vadd.f32 %v437, %v520
    %v522 = vpop.f32.mrb[0].mxu0
    %v523 = vpop.f32.mrb[0].mxu0
    %v524 = vadd.f32 %v437, %v523
    %v525 = vpop.f32.mrb[0].mxu0
    %526 = vdwg.mxu0
    %v527 = vmax.f32 %v521, 0.0
    %v528 = vmax.f32 %v524, 0.0
    %v529 = vpack.c.bf16 %v528, %v527
    %v530 = vld [vmem:[#allocation2 + $0x208] sm:$0xf]
    %v531 = vld [vmem:[#allocation2 + $0x210] sm:$0xf]
    %v532 = vld [vmem:[#allocation2 + $0x218] sm:$0xf]
    %v533 = vld [vmem:[#allocation2 + $0x220] sm:$0xf]
    %v534 = vld [vmem:[#allocation2 + $0x228] sm:$0xf]
    %v535 = vld [vmem:[#allocation2 + $0x230] sm:$0xf]
    %v536 = vld [vmem:[#allocation2 + $0x238] sm:$0xf]
    %v537 = vld [vmem:[#allocation2 + $0x240] sm:$0xf]
    %v538 = vld [vmem:[#allocation2 + $0x248] sm:$0xf]
    %v539 = vld [vmem:[#allocation2 + $0x250] sm:$0xf]
    %v540 = vld [vmem:[#allocation2 + $0x258] sm:$0xf]
    %v541 = vld [vmem:[#allocation2 + $0x260] sm:$0xf]
    %v542 = vld [vmem:[#allocation2 + $0x268] sm:$0xf]
    %v543 = vld [vmem:[#allocation2 + $0x270] sm:$0xf]
    %v544 = vld [vmem:[#allocation2 + $0x278] sm:$0xf]
    %v545 = vld [vmem:[#allocation2 + $0x280] sm:$0xf]
    %v546 = vld [vmem:[%s2 + $0x4] ss:$0 sm:$0xff]
    %v563 = vunpack.c.l.b16 %v530
    %v564 = vunpack.c.l.b16 %v531
    %v565 = vunpack.c.l.b16 %v532
    %v566 = vunpack.c.l.b16 %v533
    %v567 = vunpack.c.l.b16 %v534
    %v568 = vunpack.c.l.b16 %v535
    %v569 = vunpack.c.l.b16 %v536
    %v570 = vunpack.c.l.b16 %v537
    %v571 = vunpack.c.l.b16 %v538
    %v572 = vunpack.c.l.b16 %v539
    %v573 = vunpack.c.l.b16 %v540
    %v574 = vunpack.c.l.b16 %v541
    %v575 = vunpack.c.l.b16 %v542
    %v576 = vunpack.c.l.b16 %v543
    %v577 = vunpack.c.l.b16 %v544
    %v578 = vunpack.c.l.b16 %v545
    %v579 = vpack.c.b16 %v564, %v563
    %v580 = vpack.c.b16 %v566, %v565
    %v581 = vpack.c.b16 %v568, %v567
    %v582 = vpack.c.b16 %v570, %v569
    %v583 = vpack.c.b16 %v572, %v571
    %v584 = vpack.c.b16 %v574, %v573
    %v585 = vpack.c.b16 %v576, %v575
    %v586 = vpack.c.b16 %v578, %v577
    %595 = vmatprep.subr.bf16.mxu0 0
    %596 = vmatpush1.bf16.msra.mxu0 %v579
    %597 = vmatprep.subr.bf16.mxu0 0
    %598 = vmatpush1.bf16.msra.mxu0 %v580
    %599 = vmatprep.subr.bf16.mxu0 0
    %600 = vmatpush1.bf16.msra.mxu0 %v581
    %601 = vmatprep.subr.bf16.mxu0 0
    %602 = vmatpush1.bf16.msra.mxu0 %v582
    %603 = vmatprep.subr.bf16.mxu0 0
    %604 = vmatpush1.bf16.msra.mxu0 %v583
    %605 = vmatprep.subr.bf16.mxu0 0
    %606 = vmatpush1.bf16.msra.mxu0 %v584
    %607 = vmatprep.subr.bf16.mxu0 0
    %608 = vmatpush1.bf16.msra.mxu0 %v585
    %609 = vmatprep.subr.bf16.mxu0 0
    %610 = vmatpush1.bf16.msra.mxu0 %v586
    %611 = vmatprep.subr.bf16.mxu0 0
    %612 = vmatpush1.bf16.msra.mxu0 0
    %613 = vmatprep.subr.bf16.mxu0 0
    %614 = vmatpush1.bf16.msra.mxu0 0
    %615 = vmatprep.subr.bf16.mxu0 0
    %616 = vmatpush1.bf16.msra.mxu0 0
    %617 = vmatprep.subr.bf16.mxu0 0
    %618 = vmatpush1.bf16.msra.mxu0 0
    %619 = vmatprep.subr.bf16.mxu0 0
    %620 = vmatpush1.bf16.msra.mxu0 0
    %621 = vmatprep.subr.bf16.mxu0 0
    %622 = vmatpush1.bf16.msra.mxu0 0
    %623 = vmatprep.subr.bf16.mxu0 0
    %624 = vmatpush1.bf16.msra.mxu0 0
    %625 = vmatprep.subr.bf16.mxu0 0
    %626 = vmatpush1.bf16.msra.mxu0 0
    %627 = vmatprep.mubr.bf16.mxu0 0
    %628 = vmatmul.mubr.bf16.gmra.mrb[0].mxu0 %v529
    %v629 = vpop.f32.mrb[0].mxu0
    %v630 = vadd.f32 %v546, %v629
    %v631 = vpop.f32.mrb[0].mxu0
    %v632 = vpop.f32.mrb[0].mxu0
    %v633 = vadd.f32 %v546, %v632
    %v634 = vpop.f32.mrb[0].mxu0
    %635 = vdwg.mxu0
    %v636 = vpack.c.bf16 %v633, %v630
    %v638 = vunpack.c.l.b16 %v636
    %v639 = vunpack.c.h.b16 %v636
    %v640 = vpack.c.b16 %v638, %v638
    %v641 = vpack.c.b16 %v639, %v639
    %644 = vst [vmem:[%s3] sm:$0xf] %v640
    %645 = vst [vmem:[%s3 + $0x4] sm:$0xf] %v641
    // Predicated region
    $region18: #{dqn_forward.1} parent=1 // pred_check
      _
    $region19: #{dqn_forward.1} parent=1 // pred_check_branch
      %647 = sbr.rel (0) target = $region21
    $region20: #{dqn_forward.1} parent=1 // pred_region
      _
    $region21: #{dqn_forward.1} parent=1 // pred_fallthru
      _
    // Predicated region
    $region22: #{dqn_forward.1} parent=1 // pred_check
      _
    $region23: #{dqn_forward.1} parent=1 // pred_check_branch
      %649 = sbr.rel (0) target = $region25
    $region24: #{dqn_forward.1} parent=1 // pred_region
      _
    $region25: #{dqn_forward.1} parent=1 // pred_fallthru
      _
    %650 = vsyncpa [#allocation3], 1

</llo_original>
